<compile_context>
chip_gen: v6e
topology: v6e:2x2x1
jax: 0.10.0
libtpu: 0.0.40
codegen_flags: <defaults>
</compile_context>

<pallas_src>
import jax
import jax.numpy as jnp
from jax.experimental import pallas as pl
from jax.experimental.pallas import tpu as pltpu


def gcn_kernel(adj_ref, x_ref, w_ref, out_ref):
    # adj_ref: (Bb, N, N)   x_ref: (Bb, N, F_in)   w_ref: (F_in, F_out_p)
    adj = adj_ref[...].astype(jnp.float32)
    x = x_ref[...].astype(jnp.float32)
    w = w_ref[...].astype(jnp.float32)

    bb, n, f_in = x.shape
    f_out = w.shape[1]

    # Degree row-sum in f32; zero-degree rows map to 0 (matches the torch
    # isinf -> 0 behaviour).  rsqrt is one EUP op in its own VLIW slot.
    degree = jnp.sum(adj, axis=-1, keepdims=True)                    # (Bb, N, 1)
    d_inv_sqrt = jnp.where(degree > 0.0, jax.lax.rsqrt(degree), 0.0)

    x_scaled = x * d_inv_sqrt                                        # (Bb, N, F_in)

    if f_in <= f_out:
        # Aggregate first: N^2 term runs over the narrow F_in dimension.
        ax = jnp.einsum("bij,bjf->bif", adj, x_scaled,
                        preferred_element_type=jnp.float32)          # (Bb, N, F_in)
        ax = ax * d_inv_sqrt                                         # row scale
        # Merge (Bb, N) so the MXU gets a bigger M for the feature transform.
        out = jnp.dot(ax.reshape(bb * n, f_in), w,
                      preferred_element_type=jnp.float32)            # (Bb*N, F_out_p)
        out = out.reshape(bb, n, f_out)
    else:
        # Transform first: N^2 term runs over the narrower F_out dimension.
        xw = jnp.dot(x_scaled.reshape(bb * n, f_in), w,
                     preferred_element_type=jnp.float32)
        xw = xw.reshape(bb, n, f_out)                                # (Bb, N, F_out_p)
        out = jnp.einsum("bij,bjf->bif", adj, xw,
                         preferred_element_type=jnp.float32)
        out = out * d_inv_sqrt                                       # row scale

    out_ref[...] = out.astype(out_ref.dtype)


def _pick_batch_block(batch, n, elem_bytes, target_rows=256,
                      max_adj_block_bytes=4 << 20):
    """Largest divisor Bb of `batch` whose adjacency block stays small while
    Bb*N reaches ~target_rows (amortizes per-grid-step overhead)."""
    best = 1
    for bb in range(1, batch + 1):
        if batch % bb:
            continue
        if bb * n * n * elem_bytes > max_adj_block_bytes:
            break
        best = bb
        if bb * n >= target_rows:
            break
    return best


def gcn_layer(x, adjacency_matrix, weight):
    """x: (B, N, F_in), adjacency_matrix: (B, N, N), weight: (F_in, F_out)."""
    B, N, F_in = x.shape
    F_out = weight.shape[1]

    # Lane-dense output: pad F_out up to a multiple of 128 so output stores
    # are full-lane vst instead of masked partial stores.  Extra columns are
    # zero and sliced off below.
    F_out_p = ((F_out + 127) // 128) * 128
    if F_out_p != F_out:
        w_p = jnp.zeros((F_in, F_out_p), weight.dtype).at[:, :F_out].set(weight)
    else:
        w_p = weight

    adj_bytes = adjacency_matrix.dtype.itemsize
    Bb = _pick_batch_block(B, N, elem_bytes=adj_bytes)
    grid = (B // Bb,)

    # FLOPs depend on the (static) matmul ordering chosen in the kernel.
    if F_in <= F_out_p:
        mm_flops = 2 * B * (N * N * F_in + N * F_in * F_out_p)
    else:
        mm_flops = 2 * B * (N * F_in * F_out_p + N * N * F_out_p)
    cost = pl.CostEstimate(
        flops=mm_flops,
        transcendentals=B * N,
        bytes_accessed=(adjacency_matrix.size * adj_bytes
                        + x.size * x.dtype.itemsize
                        + w_p.size * w_p.dtype.itemsize
                        + B * N * F_out_p * 4),
    )

    out_p = pl.pallas_call(
        gcn_kernel,
        out_shape=jax.ShapeDtypeStruct((B, N, F_out_p), jnp.float32),
        grid_spec=pltpu.PrefetchScalarGridSpec(
            num_scalar_prefetch=0,
            grid=grid,
            in_specs=[
                pl.BlockSpec((Bb, N, N), lambda b: (b, 0, 0)),       # adjacency
                pl.BlockSpec((Bb, N, F_in), lambda b: (b, 0, 0)),    # node feats
                pl.BlockSpec((F_in, F_out_p), lambda b: (0, 0)),     # weight
            ],
            out_specs=pl.BlockSpec((Bb, N, F_out_p), lambda b: (b, 0, 0)),
        ),
        compiler_params=pltpu.CompilerParams(
            dimension_semantics=("parallel",),
        ),
        cost_estimate=cost,
    )(adjacency_matrix, x, w_p)

    return out_p[..., :F_out] if F_out_p != F_out else out_p


def xavier_uniform(key, in_features, out_features, dtype=jnp.float32):
    # matches nn.init.xavier_uniform_ for a (in_features, out_features) matrix
    bound = jnp.sqrt(6.0 / (in_features + out_features))
    return jax.random.uniform(
        key, (in_features, out_features), dtype=dtype, minval=-bound, maxval=bound
    )


if __name__ == "__main__":
    B, N, F_in, F_out = 2, 16, 8, 32

    key = jax.random.PRNGKey(0)
    k_x, k_adj, k_w = jax.random.split(key, 3)

    x = jax.random.normal(k_x, (B, N, F_in), dtype=jnp.float32)

    # Symmetric binary adjacency (some rows may have zero degree -> exercises
    # the zero-degree guard).  Fed in bf16 (0/1 is exact) to halve HBM traffic
    # of the dominant N^2 term; the kernel computes in f32.
    adj_rand = jax.random.uniform(k_adj, (B, N, N))
    adj = (adj_rand < 0.3).astype(jnp.float32)
    adj = jnp.maximum(adj, jnp.swapaxes(adj, -1, -2))
    adj_bf16 = adj.astype(jnp.bfloat16)

    weight = xavier_uniform(k_w, F_in, F_out)

    out = gcn_layer(x, adj_bf16, weight)
    jax.block_until_ready(out)

    # Reference in plain JAX (same math as the PyTorch forward), f32.
    degree = jnp.sum(adj, axis=-1, keepdims=True)
    dis = jnp.power(degree, -0.5)
    dis = jnp.where(jnp.isinf(dis), 0.0, dis)
    norm_adj = adj * dis * jnp.swapaxes(dis, -1, -2)
    ref = jnp.einsum("bnm,bmf,fo->bno", norm_adj, x, weight)

    assert out.shape == (B, N, F_out)
    assert jnp.allclose(out, ref, atol=1e-4, rtol=1e-4)

    print("KERNEL_OK")
</pallas_src>

<mosaic_0001>
module attributes {stable_mosaic.version = 11 : i64} {
  func.func @gcn_kernel(%arg0: i32, %arg1: memref<2x16x16xbf16, #tpu.memory_space<vmem>>, %arg2: memref<2x16x8xf32, #tpu.memory_space<vmem>>, %arg3: memref<8x128xf32, #tpu.memory_space<vmem>>, %arg4: memref<2x16x128xf32, #tpu.memory_space<vmem>>) attributes {dimension_semantics = [#tpu.dimension_semantics<parallel>], iteration_bounds = array<i64: 1>, scalar_prefetch = 0 : i64, scratch_operands = 0 : i64, tpu.core_type = #tpu.core_type<tc>, window_params = [{transform_indices = @transform_0, window_bounds = array<i64: 2, 16, 16>}, {transform_indices = @transform_1, window_bounds = array<i64: 2, 16, 8>}, {pipeline_mode = #tpu.pipeline_mode<synchronous>, transform_indices = @transform_2, window_bounds = array<i64: 8, 128>}, {transform_indices = @transform_3, window_bounds = array<i64: 2, 16, 128>}]} {
    %c0 = arith.constant 0 : index
    %c0_0 = arith.constant 0 : index
    %c0_1 = arith.constant 0 : index
    %0 = vector.load %arg1[%c0, %c0_0, %c0_1] : memref<2x16x16xbf16, #tpu.memory_space<vmem>>, vector<2x16x16xbf16>
    %1 = arith.extf %0 : vector<2x16x16xbf16> to vector<2x16x16xf32>
    %c0_2 = arith.constant 0 : index
    %c0_3 = arith.constant 0 : index
    %c0_4 = arith.constant 0 : index
    %2 = vector.load %arg2[%c0_2, %c0_3, %c0_4] : memref<2x16x8xf32, #tpu.memory_space<vmem>>, vector<2x16x8xf32>
    %c0_5 = arith.constant 0 : index
    %c0_6 = arith.constant 0 : index
    %3 = vector.load %arg3[%c0_5, %c0_6] : memref<8x128xf32, #tpu.memory_space<vmem>>, vector<8x128xf32>
    %cst = arith.constant dense<0.000000e+00> : vector<2x16xf32>
    %4 = vector.multi_reduction <add>, %1, %cst [2] : vector<2x16x16xf32> to vector<2x16xf32>
    %5 = vector.shape_cast %4 : vector<2x16xf32> to vector<2x16x1xf32>
    %cst_7 = arith.constant 0.000000e+00 : f32
    %6 = vector.broadcast %cst_7 : f32 to vector<2x16x1xf32>
    %7 = arith.cmpf ogt, %5, %6 : vector<2x16x1xf32>
    %8 = math.rsqrt %5 : vector<2x16x1xf32>
    %cst_8 = arith.constant 0.000000e+00 : f32
    %9 = vector.broadcast %cst_8 : f32 to vector<2x16x1xf32>
    %10 = arith.select %7, %8, %9 : vector<2x16x1xi1>, vector<2x16x1xf32>
    %11 = vector.broadcast %10 : vector<2x16x1xf32> to vector<2x16x8xf32>
    %12 = arith.mulf %2, %11 : vector<2x16x8xf32>
    "tpu.trace_start"() <{level = 10 : i32, message = "bij,bjf->bif"}> : () -> ()
    %cst_9 = arith.constant dense<0.000000e+00> : vector<2x16x8xf32>
    %13 = tpu.matmul %1, %12, %cst_9 {dimension_numbers = #tpu.dot_dimension_numbers<[2], [1], [1], [2], [0, 0, 0, 1, 1, 2], [0], [0]>} : vector<2x16x16xf32>, vector<2x16x8xf32>, vector<2x16x8xf32> -> vector<2x16x8xf32>
    "tpu.trace_stop"() : () -> ()
    %14 = vector.broadcast %10 : vector<2x16x1xf32> to vector<2x16x8xf32>
    %15 = arith.mulf %13, %14 : vector<2x16x8xf32>
    %16 = vector.shape_cast %15 : vector<2x16x8xf32> to vector<32x8xf32>
    %cst_10 = arith.constant dense<0.000000e+00> : vector<32x128xf32>
    %17 = tpu.matmul %16, %3, %cst_10 {dimension_numbers = #tpu.dot_dimension_numbers<[1], [0], [0], [1], [0, 0, 1, 1], [], []>} : vector<32x8xf32>, vector<8x128xf32>, vector<32x128xf32> -> vector<32x128xf32>
    %18 = vector.shape_cast %17 : vector<32x128xf32> to vector<2x16x128xf32>
    %c0_11 = arith.constant 0 : index
    %c0_12 = arith.constant 0 : index
    %c0_13 = arith.constant 0 : index
    %19 = vector.load %arg4[%c0_11, %c0_12, %c0_13] : memref<2x16x128xf32, #tpu.memory_space<vmem>>, vector<2x16x128xf32>
    tpu.vector_store %arg4[%c0_11, %c0_12, %c0_13], %18 {strides = array<i32>} : memref<2x16x128xf32, #tpu.memory_space<vmem>>, vector<2x16x128xf32>,
    return
  }
  func.func @transform_0(%arg0: i32) -> (i32, i32, i32) {
    %c0_i32 = arith.constant 0 : i32
    %c0_i32_0 = arith.constant 0 : i32
    %c0_i32_1 = arith.constant 0 : i32
    return %arg0, %c0_i32, %c0_i32_0 : i32, i32, i32
  }
  func.func @transform_1(%arg0: i32) -> (i32, i32, i32) {
    %c0_i32 = arith.constant 0 : i32
    %c0_i32_0 = arith.constant 0 : i32
    %c0_i32_1 = arith.constant 0 : i32
    return %arg0, %c0_i32, %c0_i32_0 : i32, i32, i32
  }
  func.func @transform_2(%arg0: i32) -> (i32, i32) {
    %c0_i32 = arith.constant 0 : i32
    %c0_i32_0 = arith.constant 0 : i32
    %c0_i32_1 = arith.constant 0 : i32
    return %c0_i32, %c0_i32_0 : i32, i32
  }
  func.func @transform_3(%arg0: i32) -> (i32, i32, i32) {
    %c0_i32 = arith.constant 0 : i32
    %c0_i32_0 = arith.constant 0 : i32
    %c0_i32_1 = arith.constant 0 : i32
    return %arg0, %c0_i32, %c0_i32_0 : i32, i32, i32
  }
}

</mosaic_0001>

<llo_original>
// kernel: tpu_custom_call.1
$region0: #{tpu_custom_call.1}
  #allocation0 [shape = 'u32[]', space=smem, size = 0x4, offset = 0x4, fixed_abs, tag = 'smem constant byte address 0x4 - core index']
  #allocation1 [shape = 'u32[144,128]{1,0:T(1,128)}', space=vmem, size = 0x12000, scoped, tag = 'internal scratch']
  %s0 = inlined_call_operand.vmem [shape: bf16[2,16,16], index: 0, kind: input, shape index: {}]
  %s1 = inlined_call_operand.vmem [shape: f32[2,16,8], index: 1, kind: input, shape index: {}]
  %s2 = inlined_call_operand.vmem [shape: f32[8,128], index: 2, kind: input, shape index: {}]
  %s3 = inlined_call_operand.hbm [shape: f32[2,16,128], index: 3, kind: output, shape index: {}]
  %s4 = sld [smem:[#allocation0]]
  $region22: #{tpu_custom_call.1} parent=0
    _
  %s6 = ssub.s32 1, %s4
  %s7 = scalar_select 0, %s6, %s4
  $region1: #{tpu_custom_call.1} parent=0
    #allocation2 [shape = 'u8[16384]{0}', space=vmem, size = 0x4000, scoped, tag = 'output window, operand 0, single buffered']
    #allocation3 [shape = 's32[1]{0}', space=sflag, size = 0x4, scoped, tag = 'scoped memory for tpu_custom_call.1']
    %8 = vsyncpa [#allocation3], 0
    // Predicated region
    $region2: #{tpu_custom_call.1} parent=1 // pred_check
      _
    $region3: #{tpu_custom_call.1} parent=1 // pred_check_branch
      %10 = sbr.rel (0) target = $region5
    $region4: #{tpu_custom_call.1} parent=1 // pred_region
      _
    $region5: #{tpu_custom_call.1} parent=1 // pred_fallthru
      _
    // Predicated region
    $region6: #{tpu_custom_call.1} parent=1 // pred_check
      _
    $region7: #{tpu_custom_call.1} parent=1 // pred_check_branch
      %12 = sbr.rel (0) target = $region9
    $region8: #{tpu_custom_call.1} parent=1 // pred_region
      _
    $region9: #{tpu_custom_call.1} parent=1 // pred_fallthru
      _
    // Predicated region
    $region10: #{tpu_custom_call.1} parent=1 // pred_check
      _
    $region11: #{tpu_custom_call.1} parent=1 // pred_check_branch
      %14 = sbr.rel (0) target = $region13
    $region12: #{tpu_custom_call.1} parent=1 // pred_region
      _
    $region13: #{tpu_custom_call.1} parent=1 // pred_fallthru
      _
    %v15 = vld [vmem:[%s0] sm:$0xf]
    %v16 = vld [vmem:[%s0 + $0x4] sm:$0xf]
    %v17 = vld [vmem:[%s0 + $0x8] sm:$0xf]
    %v18 = vld [vmem:[%s0 + $0xc] sm:$0xf]
    %v19 = vunpack.c.l.bf16 %v15
    %v20 = vunpack.c.l.bf16 %v16
    %v21 = vunpack.c.l.bf16 %v17
    %v22 = vunpack.c.l.bf16 %v18
    %v23 = vld [vmem:[%s1] sm:$0xff]
    %v24 = vld [vmem:[%s1 + $0x8] sm:$0xff]
    %v25 = vld [vmem:[%s1 + $0x10] sm:$0xff]
    %v26 = vld [vmem:[%s1 + $0x18] sm:$0xff]
    %v27 = vld [vmem:[%s2] sm:$0xff]
    %vm28 = vcmask 130048
    %v29 = vsel %vm28, %v19, 0.0
    %30 = vadd.xlane.f32.xlu0 %v29
    %v31 = vpop.xlane.xlu0 %30
    %v32 = vsel %vm28, %v20, 0.0
    %33 = vadd.xlane.f32.xlu0 %v32
    %v34 = vpop.xlane.xlu0 %33
    %v35 = vsel %vm28, %v21, 0.0
    %36 = vadd.xlane.f32.xlu0 %v35
    %v37 = vpop.xlane.xlu0 %36
    %v38 = vsel %vm28, %v22, 0.0
    %39 = vadd.xlane.f32.xlu0 %v38
    %v40 = vpop.xlane.xlu0 %39
    %vm41 = vcmp.gt.f32.partialorder %v31, 0.0
    %vm42 = vcmp.gt.f32.partialorder %v34, 0.0
    %vm43 = vcmp.gt.f32.partialorder %v37, 0.0
    %vm44 = vcmp.gt.f32.partialorder %v40, 0.0
    %v45 = vrsqrt.pop %v31
    %v46 = vrsqrt.pop %v34
    %v47 = vrsqrt.pop %v37
    %v48 = vrsqrt.pop %v40
    %v49 = vsel %vm41, %v45, 0.0
    %v50 = vsel %vm42, %v46, 0.0
    %v51 = vsel %vm43, %v47, 0.0
    %v52 = vsel %vm44, %v48, 0.0
    %v53 = vmul.f32 %v23, %v49
    %v54 = vmul.f32 %v24, %v50
    %v55 = vmul.f32 %v25, %v51
    %v56 = vmul.f32 %v26, %v52
    %v58 = vsel %vm28, %v19, 0
    %v61 = vsel %vm28, %v20, 0
    %63 = vmatprep.subr.mxu0 0.0
    %64 = vmatpush1.msra.mxu0 0.0
    %65 = vmatprep.subr.mxu0 0.0
    %66 = vmatpush1.msra.mxu0 0.0
    %67 = vmatprep.subr.mxu0 0.0
    %68 = vmatpush1.msra.mxu0 0.0
    %69 = vmatprep.subr.mxu0 0.0
    %70 = vmatpush1.msra.mxu0 0.0
    %71 = vmatprep.subr.mxu0 0.0
    %72 = vmatpush1.msra.mxu0 0.0
    %73 = vmatprep.subr.mxu0 0.0
    %74 = vmatpush1.msra.mxu0 0.0
    %75 = vmatprep.subr.mxu0 0.0
    %76 = vmatpush1.msra.mxu0 0.0
    %77 = vmatprep.subr.mxu0 0.0
    %78 = vmatpush1.msra.mxu0 0.0
    %79 = vmatprep.subr.mxu0 0.0
    %80 = vmatpush1.msra.mxu0 0.0
    %81 = vmatprep.subr.mxu0 0.0
    %82 = vmatpush1.msra.mxu0 0.0
    %83 = vmatprep.subr.mxu0 0.0
    %84 = vmatpush1.msra.mxu0 0.0
    %85 = vmatprep.subr.mxu0 0.0
    %86 = vmatpush1.msra.mxu0 0.0
    %87 = vmatprep.subr.mxu0 0.0
    %88 = vmatpush1.msra.mxu0 0.0
    %89 = vmatprep.subr.mxu0 0.0
    %90 = vmatpush1.msra.mxu0 0.0
    %91 = vmatprep.subr.mxu0 0.0
    %92 = vmatpush1.msra.mxu0 %v54
    %93 = vmatprep.subr.mxu0 0.0
    %94 = vmatpush1.msra.mxu0 %v53
    %95 = vmatprep.subr.mxu0 0.0
    %96 = vmatpush2.msra.mxu0 0.0
    %97 = vmatprep.subr.mxu0 0.0
    %98 = vmatpush2.msra.mxu0 0.0
    %99 = vmatprep.subr.mxu0 0.0
    %100 = vmatpush2.msra.mxu0 0.0
    %101 = vmatprep.subr.mxu0 0.0
    %102 = vmatpush2.msra.mxu0 0.0
    %103 = vmatprep.subr.mxu0 0.0
    %104 = vmatpush2.msra.mxu0 0.0
    %105 = vmatprep.subr.mxu0 0.0
    %106 = vmatpush2.msra.mxu0 0.0
    %107 = vmatprep.subr.mxu0 0.0
    %108 = vmatpush2.msra.mxu0 0.0
    %109 = vmatprep.subr.mxu0 0.0
    %110 = vmatpush2.msra.mxu0 0.0
    %111 = vmatprep.subr.mxu0 0.0
    %112 = vmatpush2.msra.mxu0 0.0
    %113 = vmatprep.subr.mxu0 0.0
    %114 = vmatpush2.msra.mxu0 0.0
    %115 = vmatprep.subr.mxu0 0.0
    %116 = vmatpush2.msra.mxu0 0.0
    %117 = vmatprep.subr.mxu0 0.0
    %118 = vmatpush2.msra.mxu0 0.0
    %119 = vmatprep.subr.mxu0 0.0
    %120 = vmatpush2.msra.mxu0 0.0
    %121 = vmatprep.subr.mxu0 0.0
    %122 = vmatpush2.msra.mxu0 0.0
    %123 = vmatprep.subr.mxu0 0.0
    %124 = vmatpush2.msra.mxu0 0.0
    %125 = vmatprep.subr.mxu0 0.0
    %126 = vmatpush2.msra.mxu0 0.0
    %127 = vmatprep.mubr.f32.mxu0 0.0
    %128 = vmatmul.mubr.f32.gmra.mxu0 %v58
    %v129 = vpop.f32.mrf.mxu0
    %v130 = vadd.f32 0.0, %v129
    %v131 = vpop.f32.mrf.mxu0
    %132 = vmatprep.mubr.f32.mxu0 0.0
    %133 = vmatmul.mubr.f32.gmra.mxu0 %v61
    %v134 = vpop.f32.mrf.mxu0
    %v135 = vadd.f32 0.0, %v134
    %v136 = vpop.f32.mrf.mxu0
    %137 = vdwg.mxu0
    %v139 = vsel %vm28, %v21, 0
    %v142 = vsel %vm28, %v22, 0
    %144 = vmatprep.subr.mxu0 0.0
    %145 = vmatpush1.msra.mxu0 0.0
    %146 = vmatprep.subr.mxu0 0.0
    %147 = vmatpush1.msra.mxu0 0.0
    %148 = vmatprep.subr.mxu0 0.0
    %149 = vmatpush1.msra.mxu0 0.0
    %150 = vmatprep.subr.mxu0 0.0
    %151 = vmatpush1.msra.mxu0 0.0
    %152 = vmatprep.subr.mxu0 0.0
    %153 = vmatpush1.msra.mxu0 0.0
    %154 = vmatprep.subr.mxu0 0.0
    %155 = vmatpush1.msra.mxu0 0.0
    %156 = vmatprep.subr.mxu0 0.0
    %157 = vmatpush1.msra.mxu0 0.0
    %158 = vmatprep.subr.mxu0 0.0
    %159 = vmatpush1.msra.mxu0 0.0
    %160 = vmatprep.subr.mxu0 0.0
    %161 = vmatpush1.msra.mxu0 0.0
    %162 = vmatprep.subr.mxu0 0.0
    %163 = vmatpush1.msra.mxu0 0.0
    %164 = vmatprep.subr.mxu0 0.0
    %165 = vmatpush1.msra.mxu0 0.0
    %166 = vmatprep.subr.mxu0 0.0
    %167 = vmatpush1.msra.mxu0 0.0
    %168 = vmatprep.subr.mxu0 0.0
    %169 = vmatpush1.msra.mxu0 0.0
    %170 = vmatprep.subr.mxu0 0.0
    %171 = vmatpush1.msra.mxu0 0.0
    %172 = vmatprep.subr.mxu0 0.0
    %173 = vmatpush1.msra.mxu0 %v56
    %174 = vmatprep.subr.mxu0 0.0
    %175 = vmatpush1.msra.mxu0 %v55
    %176 = vmatprep.subr.mxu0 0.0
    %177 = vmatpush2.msra.mxu0 0.0
    %178 = vmatprep.subr.mxu0 0.0
    %179 = vmatpush2.msra.mxu0 0.0
    %180 = vmatprep.subr.mxu0 0.0
    %181 = vmatpush2.msra.mxu0 0.0
    %182 = vmatprep.subr.mxu0 0.0
    %183 = vmatpush2.msra.mxu0 0.0
    %184 = vmatprep.subr.mxu0 0.0
    %185 = vmatpush2.msra.mxu0 0.0
    %186 = vmatprep.subr.mxu0 0.0
    %187 = vmatpush2.msra.mxu0 0.0
    %188 = vmatprep.subr.mxu0 0.0
    %189 = vmatpush2.msra.mxu0 0.0
    %190 = vmatprep.subr.mxu0 0.0
    %191 = vmatpush2.msra.mxu0 0.0
    %192 = vmatprep.subr.mxu0 0.0
    %193 = vmatpush2.msra.mxu0 0.0
    %194 = vmatprep.subr.mxu0 0.0
    %195 = vmatpush2.msra.mxu0 0.0
    %196 = vmatprep.subr.mxu0 0.0
    %197 = vmatpush2.msra.mxu0 0.0
    %198 = vmatprep.subr.mxu0 0.0
    %199 = vmatpush2.msra.mxu0 0.0
    %200 = vmatprep.subr.mxu0 0.0
    %201 = vmatpush2.msra.mxu0 0.0
    %202 = vmatprep.subr.mxu0 0.0
    %203 = vmatpush2.msra.mxu0 0.0
    %204 = vmatprep.subr.mxu0 0.0
    %205 = vmatpush2.msra.mxu0 0.0
    %206 = vmatprep.subr.mxu0 0.0
    %207 = vmatpush2.msra.mxu0 0.0
    %208 = vmatprep.mubr.f32.mxu0 0.0
    %209 = vmatmul.mubr.f32.gmra.mxu0 %v139
    %v210 = vpop.f32.mrf.mxu0
    %v211 = vadd.f32 0.0, %v210
    %v212 = vpop.f32.mrf.mxu0
    %213 = vmatprep.mubr.f32.mxu0 0.0
    %214 = vmatmul.mubr.f32.gmra.mxu0 %v142
    %v215 = vpop.f32.mrf.mxu0
    %v216 = vadd.f32 0.0, %v215
    %v217 = vpop.f32.mrf.mxu0
    %218 = vdwg.mxu0
    %v219 = vmul.f32 %v130, %v49
    %v220 = vmul.f32 %v135, %v50
    %v221 = vmul.f32 %v211, %v51
    %v222 = vmul.f32 %v216, %v52
    %vm223 = vcmask 64512
    %v225 = vsel %vm223, %v219, 0
    %v228 = vsel %vm223, %v220, 0
    %v231 = vsel %vm223, %v221, 0
    %v234 = vsel %vm223, %v222, 0
    %236 = vmatprep.subr.mxu0 0.0
    %237 = vmatpush1.msra.mxu0 0.0
    %238 = vmatprep.subr.mxu0 0.0
    %239 = vmatpush1.msra.mxu0 0.0
    %240 = vmatprep.subr.mxu0 0.0
    %241 = vmatpush1.msra.mxu0 0.0
    %242 = vmatprep.subr.mxu0 0.0
    %243 = vmatpush1.msra.mxu0 0.0
    %244 = vmatprep.subr.mxu0 0.0
    %245 = vmatpush1.msra.mxu0 0.0
    %246 = vmatprep.subr.mxu0 0.0
    %247 = vmatpush1.msra.mxu0 0.0
    %248 = vmatprep.subr.mxu0 0.0
    %249 = vmatpush1.msra.mxu0 0.0
    %250 = vmatprep.subr.mxu0 0.0
    %251 = vmatpush1.msra.mxu0 0.0
    %252 = vmatprep.subr.mxu0 0.0
    %253 = vmatpush1.msra.mxu0 0.0
    %254 = vmatprep.subr.mxu0 0.0
    %255 = vmatpush1.msra.mxu0 0.0
    %256 = vmatprep.subr.mxu0 0.0
    %257 = vmatpush1.msra.mxu0 0.0
    %258 = vmatprep.subr.mxu0 0.0
    %259 = vmatpush1.msra.mxu0 0.0
    %260 = vmatprep.subr.mxu0 0.0
    %261 = vmatpush1.msra.mxu0 0.0
    %262 = vmatprep.subr.mxu0 0.0
    %263 = vmatpush1.msra.mxu0 0.0
    %264 = vmatprep.subr.mxu0 0.0
    %265 = vmatpush1.msra.mxu0 0.0
    %266 = vmatprep.subr.mxu0 0.0
    %267 = vmatpush1.msra.mxu0 %v27
    %268 = vmatprep.subr.mxu0 0.0
    %269 = vmatpush2.msra.mxu0 0.0
    %270 = vmatprep.subr.mxu0 0.0
    %271 = vmatpush2.msra.mxu0 0.0
    %272 = vmatprep.subr.mxu0 0.0
    %273 = vmatpush2.msra.mxu0 0.0
    %274 = vmatprep.subr.mxu0 0.0
    %275 = vmatpush2.msra.mxu0 0.0
    %276 = vmatprep.subr.mxu0 0.0
    %277 = vmatpush2.msra.mxu0 0.0
    %278 = vmatprep.subr.mxu0 0.0
    %279 = vmatpush2.msra.mxu0 0.0
    %280 = vmatprep.subr.mxu0 0.0
    %281 = vmatpush2.msra.mxu0 0.0
    %282 = vmatprep.subr.mxu0 0.0
    %283 = vmatpush2.msra.mxu0 0.0
    %284 = vmatprep.subr.mxu0 0.0
    %285 = vmatpush2.msra.mxu0 0.0
    %286 = vmatprep.subr.mxu0 0.0
    %287 = vmatpush2.msra.mxu0 0.0
    %288 = vmatprep.subr.mxu0 0.0
    %289 = vmatpush2.msra.mxu0 0.0
    %290 = vmatprep.subr.mxu0 0.0
    %291 = vmatpush2.msra.mxu0 0.0
    %292 = vmatprep.subr.mxu0 0.0
    %293 = vmatpush2.msra.mxu0 0.0
    %294 = vmatprep.subr.mxu0 0.0
    %295 = vmatpush2.msra.mxu0 0.0
    %296 = vmatprep.subr.mxu0 0.0
    %297 = vmatpush2.msra.mxu0 0.0
    %298 = vmatprep.subr.mxu0 0.0
    %299 = vmatpush2.msra.mxu0 0.0
    %300 = vmatprep.mubr.f32.mxu0 0.0
    %301 = vmatmul.mubr.f32.gmra.mxu0 %v225
    %v302 = vpop.f32.mrf.mxu0
    %v303 = vadd.f32 0.0, %v302
    %v304 = vpop.f32.mrf.mxu0
    %305 = vmatprep.mubr.f32.mxu0 0.0
    %306 = vmatmul.mubr.f32.gmra.mxu0 %v228
    %v307 = vpop.f32.mrf.mxu0
    %v308 = vadd.f32 0.0, %v307
    %v309 = vpop.f32.mrf.mxu0
    %310 = vmatprep.mubr.f32.mxu0 0.0
    %311 = vmatmul.mubr.f32.gmra.mxu0 %v231
    %v312 = vpop.f32.mrf.mxu0
    %v313 = vadd.f32 0.0, %v312
    %v314 = vpop.f32.mrf.mxu0
    %315 = vmatprep.mubr.f32.mxu0 0.0
    %316 = vmatmul.mubr.f32.gmra.mxu0 %v234
    %v317 = vpop.f32.mrf.mxu0
    %v318 = vadd.f32 0.0, %v317
    %v319 = vpop.f32.mrf.mxu0
    %320 = vdwg.mxu0
    %321 = vst [vmem:[#allocation2] sm:$0xff] %v303
    %322 = vst [vmem:[#allocation2 + $0x8] sm:$0xff] %v308
    %323 = vst [vmem:[#allocation2 + $0x10] sm:$0xff] %v313
    %324 = vst [vmem:[#allocation2 + $0x18] sm:$0xff] %v318
    // Predicated region
    $region14: #{tpu_custom_call.1} parent=1 // pred_check
      _
    $region15: #{tpu_custom_call.1} parent=1 // pred_check_branch
      %326 = sbr.rel (0) target = $region17
    $region16: #{tpu_custom_call.1} parent=1 // pred_region
      %s328 = ssub.s32 512, 512
      %329 = vsyncadd [#allocation3], %s328
      %s330 = sshll.u32 [#allocation2], 4
      %s331 = int_to_ptr.vmem [resolvable:$true] %s330
      %336 = dma.vmem_to_hbm [thread:$0]  %s331, 512, %s3, [#allocation3], 128, 128, 8
    $region17: #{tpu_custom_call.1} parent=1 // pred_fallthru
      _
    // Predicated region
    $region18: #{tpu_custom_call.1} parent=1 // pred_check
      _
    $region19: #{tpu_custom_call.1} parent=1 // pred_check_branch
      %338 = sbr.rel (0) target = $region21
    $region20: #{tpu_custom_call.1} parent=1 // pred_region
      %339 = dma.done [#allocation3], 512
    $region21: #{tpu_custom_call.1} parent=1 // pred_fallthru
      _
    %340 = vsyncpa [#allocation3], 1

</llo_original>
